<compile_context>
chip_gen: v6e
topology: v6e:2x2x1
jax: 0.10.0
libtpu: 0.0.40
codegen_flags: <defaults>
</compile_context>

<pallas_src>
import jax
import jax.numpy as jnp
from jax.experimental import pallas as pl
from jax.experimental.pallas import tpu as pltpu


# ---------------------------------------------------------------------------
# Kernel: one batch tile of the 3-layer MLP per grid step.
# ---------------------------------------------------------------------------
def critic_kernel(x_ref, w1_ref, b1_ref, w2_ref, b2_ref, w3_ref, b3_ref, o_ref):
    # x streams at its HBM dtype (f32); one cheap VPU cast before the MXU.
    x = x_ref[...].astype(w1_ref.dtype)                               # (TB, D) bf16

    h1 = jnp.dot(x, w1_ref[...], preferred_element_type=jnp.float32) + b1_ref[...]
    h1 = jnp.maximum(h1, 0.0).astype(w2_ref.dtype)                    # (TB, 64) bf16

    h2 = jnp.dot(h1, w2_ref[...], preferred_element_type=jnp.float32) + b2_ref[...]
    h2 = jnp.maximum(h2, 0.0)                                         # (TB, 128) f32

    # Final Linear(128, 1): N=1 would waste an MXU push and force a lane-sparse
    # store, so do it as VPU multiply + XLU lane reduction. Bias is an SMEM scalar.
    w3_row = w3_ref[...].astype(jnp.float32)                          # (1, 128)
    out = jnp.sum(h2 * w3_row, axis=-1, keepdims=True) + b3_ref[0, 0]  # (TB, 1)

    # Pack rows into a full (R, 128) tile (batch b -> (b // 128, b % 128)) so the
    # store is lane- and sublane-dense (no masked vst).
    o_ref[...] = out.reshape(o_ref.shape).astype(o_ref.dtype)          # (1, R, 128)


# ---------------------------------------------------------------------------
# Batch-tile selection.
# ---------------------------------------------------------------------------
def _choose_block_b(batch, inp_size, max_block=1024):
    """Rows per grid step.

    * multiple of 128 (output packs as (block_b//128, 128) tiles)
    * as large as possible, default 1024, to amortize per-step overhead
    * >= 2 grid steps when the batch allows (v7x has 2 TensorCores on the
      "parallel" axis); for batches in [512, 1024] this also keeps M >= 256
      which fills the v6e 256-row MXU
    * capped so the double-buffered f32 x tile (2 * block_b * D * 4 bytes)
      stays well under v7x's 32 MiB scoped-VMEM default for large state dims
    """
    round_up = lambda v, m: -(-v // m) * m
    if batch > max_block:
        block = max_block
    else:
        block = min(max_block, max(128, round_up(max(batch // 2, 1), 128)))
    bytes_per_row = 8 * max(int(inp_size), 1)          # 2 buffers * 4 bytes * D
    max_by_vmem = max(128, ((8 << 20) // bytes_per_row) // 128 * 128)
    return min(block, max_by_vmem)


# ---------------------------------------------------------------------------
# Batched forward: x (B, inp_size) f32 -> (B, 1) f32
# ---------------------------------------------------------------------------
def critic_forward_batched(xb, params, *, block_b=None):
    w1, b1, w2, b2, w3, b3 = params
    B, D = xb.shape
    assert D == w1.shape[0]

    if block_b is None:
        block_b = _choose_block_b(B, D)
    assert block_b % 128 == 0

    n_blocks = pl.cdiv(B, block_b)
    Bp = n_blocks * block_b
    rows = block_b // 128

    # No full-array copy: x streams directly from HBM. Only a ragged tail is
    # zero-padded (rows are independent, so pad rows never contaminate valid
    # outputs and are sliced off below).
    xp = xb if Bp == B else jnp.pad(xb, ((0, Bp - B), (0, 0)))

    const2 = lambda i: (0, 0)  # weights/biases: same block every step -> resident

    out = pl.pallas_call(
        critic_kernel,
        out_shape=jax.ShapeDtypeStruct((n_blocks, rows, 128), jnp.float32),
        grid=(n_blocks,),
        in_specs=[
            pl.BlockSpec((block_b, D), lambda i: (i, 0)),       # x tile streams
            pl.BlockSpec(w1.shape, const2),                     # (D, 64)   VMEM-resident
            pl.BlockSpec(b1.shape, const2),                     # (1, 64)
            pl.BlockSpec(w2.shape, const2),                     # (64, 128)
            pl.BlockSpec(b2.shape, const2),                     # (1, 128)
            pl.BlockSpec(w3.shape, const2),                     # (1, 128)  (out,in) row
            pl.BlockSpec(memory_space=pltpu.MemorySpace.SMEM),  # (1, 1) b3 scalar
        ],
        out_specs=pl.BlockSpec((1, rows, 128), lambda i: (i, 0, 0)),
        compiler_params=pltpu.CompilerParams(
            dimension_semantics=("parallel",),                  # shards over v7x's 2 TCs
            # vmem_limit_bytes only needs raising for very large inp_size; the
            # tile chooser already caps block_b to stay inside the default.
        ),
    )(xp, w1, b1, w2, b2, w3, b3)

    # (n_blocks, rows, 128) flattens row-major straight to batch order.
    return out.reshape(-1)[:B].reshape(B, 1)


# ---------------------------------------------------------------------------
# Single-sample forward matching the PyTorch module's semantics exactly:
# x: (inp_size,) -> (1,).
# NOTE: for true one-off single-sample inference, plain XLA fusion of three
# tiny matmuls is competitive with a Pallas custom call; this kernel is meant
# for batched replay-buffer / target-network evaluation.
# ---------------------------------------------------------------------------
def critic_forward(x, params):
    inp_size = params[0].shape[0]
    assert x.shape[0] == inp_size
    return critic_forward_batched(x.reshape(1, inp_size), params)[0]


# ---------------------------------------------------------------------------
# Parameter init: xavier_uniform_ weights, zero biases (as in the PyTorch
# __init__).  Weights stored (in_features, out_features), bf16; biases f32.
# The last layer's weight is kept as its (out=1, in=128) row for the VPU path.
# ---------------------------------------------------------------------------
def xavier_uniform(key, fan_in, fan_out, dtype):
    bound = jnp.sqrt(6.0 / (fan_in + fan_out))
    w = jax.random.uniform(key, (fan_in, fan_out), minval=-bound, maxval=bound,
                           dtype=jnp.float32)
    return w.astype(dtype)


def init_critic_params(key, inp_size, param_dtype=jnp.bfloat16):
    k1, k2, k3 = jax.random.split(key, 3)
    w1 = xavier_uniform(k1, inp_size, 64, param_dtype)          # (D, 64)
    b1 = jnp.zeros((1, 64), jnp.float32)
    w2 = xavier_uniform(k2, 64, 128, param_dtype)               # (64, 128)
    b2 = jnp.zeros((1, 128), jnp.float32)
    w3 = xavier_uniform(k3, 128, 1, param_dtype).T              # (1, 128) row
    b3 = jnp.zeros((1, 1), jnp.float32)                         # SMEM scalar
    return (w1, b1, w2, b2, w3, b3)


# Pure-JAX reference mirroring the kernel's precision path (bf16 weights,
# f32 accumulation) for the correctness check.
# TODO(synk): bf16 weights are a deliberate precision deviation from the f32
# PyTorch module; pass param_dtype=jnp.float32 for bit-closer parity.
def critic_ref_batched(xb, params):
    w1, b1, w2, b2, w3, b3 = params
    f32 = jnp.float32
    x = xb.astype(w1.dtype).astype(f32)
    h1 = jnp.maximum(x @ w1.astype(f32) + b1, 0.0)
    h1 = h1.astype(w2.dtype).astype(f32)
    h2 = jnp.maximum(h1 @ w2.astype(f32) + b2, 0.0)
    return h2 @ w3.astype(f32).T + b3                           # (B, 1)


if __name__ == "__main__":
    inp_size = 32

    key = jax.random.PRNGKey(0)
    k_params, k_x = jax.random.split(key)
    params = init_critic_params(k_params, inp_size)

    # Batched replay-buffer style evaluation; batch=192 exercises the
    # multi-block grid ("parallel" axis) and the ragged-tail padding path.
    batch = 192
    xb = jax.random.normal(k_x, (batch, inp_size), dtype=jnp.float32)

    out_b = jax.block_until_ready(critic_forward_batched(xb, params))
    ref_b = critic_ref_batched(xb, params)
    assert out_b.shape == (batch, 1)
    assert jnp.allclose(out_b, ref_b, atol=1e-3, rtol=1e-3)

    # Single-sample path matching the PyTorch forward: (inp_size,) -> (1,).
    out_1 = jax.block_until_ready(critic_forward(xb[0], params))
    assert out_1.shape == (1,)
    assert jnp.allclose(out_1, ref_b[0], atol=1e-3, rtol=1e-3)

    print("KERNEL_OK")
</pallas_src>

<mosaic_0001>
module attributes {stable_mosaic.version = 11 : i64} {
  func.func @critic_kernel(%arg0: i32, %arg1: memref<128x32xf32, #tpu.memory_space<vmem>>, %arg2: memref<32x64xbf16, #tpu.memory_space<vmem>>, %arg3: memref<1x64xf32, #tpu.memory_space<vmem>>, %arg4: memref<64x128xbf16, #tpu.memory_space<vmem>>, %arg5: memref<1x128xf32, #tpu.memory_space<vmem>>, %arg6: memref<1x128xbf16, #tpu.memory_space<vmem>>, %arg7: memref<1x1xf32, #tpu.memory_space<smem>>, %arg8: memref<1x1x128xf32, #tpu.memory_space<vmem>>) attributes {dimension_semantics = [#tpu.dimension_semantics<parallel>], iteration_bounds = array<i64: 2>, scalar_prefetch = 0 : i64, scratch_operands = 0 : i64, tpu.core_type = #tpu.core_type<tc>, window_params = [{transform_indices = @transform_0, window_bounds = array<i64: 128, 32>}, {pipeline_mode = #tpu.pipeline_mode<synchronous>, transform_indices = @transform_1, window_bounds = array<i64: 32, 64>}, {pipeline_mode = #tpu.pipeline_mode<synchronous>, transform_indices = @transform_2, window_bounds = array<i64: 1, 64>}, {pipeline_mode = #tpu.pipeline_mode<synchronous>, transform_indices = @transform_3, window_bounds = array<i64: 64, 128>}, {pipeline_mode = #tpu.pipeline_mode<synchronous>, transform_indices = @transform_4, window_bounds = array<i64: 1, 128>}, {pipeline_mode = #tpu.pipeline_mode<synchronous>, transform_indices = @transform_5, window_bounds = array<i64: 1, 128>}, {transform_indices = @transform_6, window_bounds = array<i64: 1, 1>}, {transform_indices = @transform_7, window_bounds = array<i64: 1, 1, 128>}]} {
    %c0 = arith.constant 0 : index
    %c0_0 = arith.constant 0 : index
    %0 = vector.load %arg1[%c0, %c0_0] : memref<128x32xf32, #tpu.memory_space<vmem>>, vector<128x32xf32>
    %1 = arith.truncf %0 : vector<128x32xf32> to vector<128x32xbf16>
    %c0_1 = arith.constant 0 : index
    %c0_2 = arith.constant 0 : index
    %2 = vector.load %arg2[%c0_1, %c0_2] : memref<32x64xbf16, #tpu.memory_space<vmem>>, vector<32x64xbf16>
    %cst = arith.constant dense<0.000000e+00> : vector<128x64xf32>
    %3 = tpu.matmul %1, %2, %cst {dimension_numbers = #tpu.dot_dimension_numbers<[1], [0], [0], [1], [0, 0, 1, 1], [], []>} : vector<128x32xbf16>, vector<32x64xbf16>, vector<128x64xf32> -> vector<128x64xf32>
    %c0_3 = arith.constant 0 : index
    %c0_4 = arith.constant 0 : index
    %4 = vector.load %arg3[%c0_3, %c0_4] : memref<1x64xf32, #tpu.memory_space<vmem>>, vector<1x64xf32>
    %5 = vector.broadcast %4 : vector<1x64xf32> to vector<128x64xf32>
    %6 = arith.addf %3, %5 : vector<128x64xf32>
    %cst_5 = arith.constant 0.000000e+00 : f32
    %7 = vector.broadcast %cst_5 : f32 to vector<128x64xf32>
    %8 = arith.maximumf %6, %7 : vector<128x64xf32>
    %9 = arith.truncf %8 : vector<128x64xf32> to vector<128x64xbf16>
    %c0_6 = arith.constant 0 : index
    %c0_7 = arith.constant 0 : index
    %10 = vector.load %arg4[%c0_6, %c0_7] : memref<64x128xbf16, #tpu.memory_space<vmem>>, vector<64x128xbf16>
    %cst_8 = arith.constant dense<0.000000e+00> : vector<128x128xf32>
    %11 = tpu.matmul %9, %10, %cst_8 {dimension_numbers = #tpu.dot_dimension_numbers<[1], [0], [0], [1], [0, 0, 1, 1], [], []>} : vector<128x64xbf16>, vector<64x128xbf16>, vector<128x128xf32> -> vector<128x128xf32>
    %c0_9 = arith.constant 0 : index
    %c0_10 = arith.constant 0 : index
    %12 = vector.load %arg5[%c0_9, %c0_10] : memref<1x128xf32, #tpu.memory_space<vmem>>, vector<1x128xf32>
    %13 = vector.broadcast %12 : vector<1x128xf32> to vector<128x128xf32>
    %14 = arith.addf %11, %13 : vector<128x128xf32>
    %cst_11 = arith.constant 0.000000e+00 : f32
    %15 = vector.broadcast %cst_11 : f32 to vector<128x128xf32>
    %16 = arith.maximumf %14, %15 : vector<128x128xf32>
    %c0_12 = arith.constant 0 : index
    %c0_13 = arith.constant 0 : index
    %17 = vector.load %arg6[%c0_12, %c0_13] : memref<1x128xbf16, #tpu.memory_space<vmem>>, vector<1x128xbf16>
    %18 = arith.extf %17 : vector<1x128xbf16> to vector<1x128xf32>
    %19 = vector.broadcast %18 : vector<1x128xf32> to vector<128x128xf32>
    %20 = arith.mulf %16, %19 : vector<128x128xf32>
    %cst_14 = arith.constant dense<0.000000e+00> : vector<128xf32>
    %21 = vector.multi_reduction <add>, %20, %cst_14 [1] : vector<128x128xf32> to vector<128xf32>
    %22 = vector.shape_cast %21 : vector<128xf32> to vector<128x1xf32>
    %c0_15 = arith.constant 0 : index
    %c0_16 = arith.constant 0 : index
    %23 = memref.load %arg7[%c0_15, %c0_16] : memref<1x1xf32, #tpu.memory_space<smem>>
    %24 = vector.broadcast %23 : f32 to vector<128x1xf32>
    %25 = arith.addf %22, %24 : vector<128x1xf32>
    %26 = vector.shape_cast %25 : vector<128x1xf32> to vector<1x1x128xf32>
    %c0_17 = arith.constant 0 : index
    %c0_18 = arith.constant 0 : index
    %c0_19 = arith.constant 0 : index
    %27 = vector.load %arg8[%c0_17, %c0_18, %c0_19] : memref<1x1x128xf32, #tpu.memory_space<vmem>>, vector<1x1x128xf32>
    tpu.vector_store %arg8[%c0_17, %c0_18, %c0_19], %26 {strides = array<i32>} : memref<1x1x128xf32, #tpu.memory_space<vmem>>, vector<1x1x128xf32>,
    return
  }
  func.func @transform_0(%arg0: i32) -> (i32, i32) {
    %c0_i32 = arith.constant 0 : i32
    %c0_i32_0 = arith.constant 0 : i32
    return %arg0, %c0_i32 : i32, i32
  }
  func.func @transform_1(%arg0: i32) -> (i32, i32) {
    %c0_i32 = arith.constant 0 : i32
    %c0_i32_0 = arith.constant 0 : i32
    %c0_i32_1 = arith.constant 0 : i32
    return %c0_i32, %c0_i32_0 : i32, i32
  }
  func.func @transform_2(%arg0: i32) -> (i32, i32) {
    %c0_i32 = arith.constant 0 : i32
    %c0_i32_0 = arith.constant 0 : i32
    %c0_i32_1 = arith.constant 0 : i32
    return %c0_i32, %c0_i32_0 : i32, i32
  }
  func.func @transform_3(%arg0: i32) -> (i32, i32) {
    %c0_i32 = arith.constant 0 : i32
    %c0_i32_0 = arith.constant 0 : i32
    %c0_i32_1 = arith.constant 0 : i32
    return %c0_i32, %c0_i32_0 : i32, i32
  }
  func.func @transform_4(%arg0: i32) -> (i32, i32) {
    %c0_i32 = arith.constant 0 : i32
    %c0_i32_0 = arith.constant 0 : i32
    %c0_i32_1 = arith.constant 0 : i32
    return %c0_i32, %c0_i32_0 : i32, i32
  }
  func.func @transform_5(%arg0: i32) -> (i32, i32) {
    %c0_i32 = arith.constant 0 : i32
    %c0_i32_0 = arith.constant 0 : i32
    %c0_i32_1 = arith.constant 0 : i32
    return %c0_i32, %c0_i32_0 : i32, i32
  }
  func.func @transform_6(%arg0: i32) -> (i32, i32) {
    %c0_i32 = arith.constant 0 : i32
    %c0_i32_0 = arith.constant 0 : i32
    %c0_i32_1 = arith.constant 0 : i32
    return %c0_i32, %c0_i32_0 : i32, i32
  }
  func.func @transform_7(%arg0: i32) -> (i32, i32, i32) {
    %c0_i32 = arith.constant 0 : i32
    %c0_i32_0 = arith.constant 0 : i32
    %c0_i32_1 = arith.constant 0 : i32
    return %arg0, %c0_i32, %c0_i32_0 : i32, i32, i32
  }
}

</mosaic_0001>

<llo_original>
// kernel: tpu_custom_call.1
$region0: #{tpu_custom_call.1}
  #allocation0 [shape = 'u32[]', space=smem, size = 0x4, offset = 0x4, fixed_abs, tag = 'smem constant byte address 0x4 - core index']
  #allocation1 [shape = 'u32[144,128]{1,0:T(1,128)}', space=vmem, size = 0x12000, scoped, tag = 'internal scratch']
  #allocation2 [shape = 'f32[1,1]{1,0:T(1,128)S(6)}', space=smem, size = 0x200, scoped, tag = 'scoped memory for tpu_custom_call.1']
  %s0 = inlined_call_operand.vmem [shape: f32[256,32], index: 0, kind: input, shape index: {}]
  %s1 = inlined_call_operand.vmem [shape: bf16[32,64], index: 1, kind: input, shape index: {}]
  %s2 = inlined_call_operand.vmem [shape: f32[1,64], index: 2, kind: input, shape index: {}]
  %s3 = inlined_call_operand.vmem [shape: bf16[64,128], index: 3, kind: input, shape index: {}]
  %s4 = inlined_call_operand.vmem [shape: f32[1,128], index: 4, kind: input, shape index: {}]
  %s5 = inlined_call_operand.vmem [shape: bf16[1,128], index: 5, kind: input, shape index: {}]
  %s6 = inlined_call_operand.<no memory space> [shape: f32[1,1], index: 6, kind: input, shape index: {}]
  %s7 = inlined_call_operand.hbm [shape: f32[2,1,128], index: 7, kind: output, shape index: {}]
  %s8 = sld [smem:[#allocation0]]
  $region61: #{tpu_custom_call.1} parent=0
    _
  %s10 = ssub.s32 1, %s8
  %s11 = scalar_select 0, %s10, %s8
  %12 = sst [smem:[#allocation2]] %s6
  $region1: #{tpu_custom_call.1} parent=0
    #allocation3 [shape = 'u8[1024]{0}', space=vmem, size = 0x400, scoped, tag = 'output window, operand 0']
    #allocation4 [shape = 's32[2]{0}', space=sflag, size = 0x8, scoped, tag = 'scoped memory for tpu_custom_call.1']
    %13 = vsyncpa [#allocation4], 0
    %s14 = scalar_lea.sflag [#allocation4], 1
    %15 = vsyncpa %s14, 0
    loop: start=0, step=1, limit=4
    $region2: #{tpu_custom_call.1} parent=1 // loop_pre_header
      _
    $region3: #{tpu_custom_call.1} parent=1 // loop_header
      %s17 = sphi 0, %s21
      %p18 = scmp.ge.s32.totalorder %s17, 4
      %s27 = sphi 0, %s29
      %s30 = sphi 0, %s27
      %s31 = sphi 0, %s30
      %s47 = sphi 0, %s31
      %s51 = sphi 0, %s51
      %s53 = sphi 0, %s51
      %s54 = sphi 0, %s53
      %s68 = sphi 0, %s54
      %s72 = sphi 0, %s72
      %s74 = sphi 0, %s72
      %s75 = sphi 0, %s74
      %s89 = sphi 0, %s75
      %s93 = sphi 0, %s93
      %s95 = sphi 0, %s93
      %s96 = sphi 0, %s95
      %s110 = sphi 0, %s96
      %s114 = sphi 0, %s114
      %s116 = sphi 0, %s114
      %s117 = sphi 0, %s116
      %s131 = sphi 0, %s117
      %s135 = sphi 0, %s135
      %s137 = sphi 0, %s135
      %s138 = sphi 0, %s137
      %s152 = sphi 0, %s138
      %s156 = sphi 0, %s156
      %s158 = sphi 0, %s156
      %s159 = sphi 0, %s158
      %s173 = sphi 0, %s159
      %s179 = sphi 0, %s181
      %s182 = sphi 0, %s179
      %s183 = sphi 0, %s182
      %s199 = sphi 0, %s183
    $region4: #{tpu_custom_call.1} parent=1 // loop_header_branch
      %20 = sbr.rel (%p18) target = $region8
    $region5: #{tpu_custom_call.1} parent=1 // loop_body
      %s22 = ssub.s32 %s17, 1
      %s23 = ssub.s32 %s17, 2
      %s24 = sadd.s32 %s17, 1
      %s25 = ssub.s32 %s17, %s24
      %p26 = scmp.eq.s32.totalorder %s25, 0
      %s28 = sadd.s32 %s27, 1
      %s29 = scalar_select %p26, %s27, %s28
      %p32 = pneg %p26
      %p33 = scmp.eq.s32.totalorder %s17, 1
      %p34 = por %p32, %p33
      %p35 = scmp.ne.s32.totalorder %s27, %s30
      %p36 = scmp.eq.s32.totalorder %s17, 0
      %p37 = por %p35, %p36
      %p38 = scmp.ne.s32.totalorder %s27, %s30
      %p39 = scmp.eq.s32.totalorder %s22, 1
      %p40 = por %p38, %p39
      %p41 = scmp.ne.s32.totalorder %s30, %s31
      %p42 = scmp.eq.s32.totalorder %s22, 0
      %p43 = por %p41, %p42
      %p44 = scmp.ne.s32.totalorder %s30, %s31
      %p45 = scmp.eq.s32.totalorder %s23, 1
      %p46 = por %p44, %p45
      %p48 = scmp.ne.s32.totalorder %s31, %s47
      %p49 = scmp.eq.s32.totalorder %s23, 0
      %p50 = por %p48, %p49
      %s52 = sadd.s32 %s51, 1
      %p55 = scmp.eq.s32.totalorder %s17, 1
      %p56 = scmp.ne.s32.totalorder %s51, %s53
      %p57 = scmp.eq.s32.totalorder %s17, 0
      %p58 = por %p56, %p57
      %p59 = scmp.ne.s32.totalorder %s51, %s53
      %p60 = scmp.eq.s32.totalorder %s22, 1
      %p61 = por %p59, %p60
      %p62 = scmp.ne.s32.totalorder %s53, %s54
      %p63 = scmp.eq.s32.totalorder %s22, 0
      %p64 = por %p62, %p63
      %p65 = scmp.ne.s32.totalorder %s53, %s54
      %p66 = scmp.eq.s32.totalorder %s23, 1
      %p67 = por %p65, %p66
      %p69 = scmp.ne.s32.totalorder %s54, %s68
      %p70 = scmp.eq.s32.totalorder %s23, 0
      %p71 = por %p69, %p70
      %s73 = sadd.s32 %s72, 1
      %p76 = scmp.eq.s32.totalorder %s17, 1
      %p77 = scmp.ne.s32.totalorder %s72, %s74
      %p78 = scmp.eq.s32.totalorder %s17, 0
      %p79 = por %p77, %p78
      %p80 = scmp.ne.s32.totalorder %s72, %s74
      %p81 = scmp.eq.s32.totalorder %s22, 1
      %p82 = por %p80, %p81
      %p83 = scmp.ne.s32.totalorder %s74, %s75
      %p84 = scmp.eq.s32.totalorder %s22, 0
      %p85 = por %p83, %p84
      %p86 = scmp.ne.s32.totalorder %s74, %s75
      %p87 = scmp.eq.s32.totalorder %s23, 1
      %p88 = por %p86, %p87
      %p90 = scmp.ne.s32.totalorder %s75, %s89
      %p91 = scmp.eq.s32.totalorder %s23, 0
      %p92 = por %p90, %p91
      %s94 = sadd.s32 %s93, 1
      %p97 = scmp.eq.s32.totalorder %s17, 1
      %p98 = scmp.ne.s32.totalorder %s93, %s95
      %p99 = scmp.eq.s32.totalorder %s17, 0
      %p100 = por %p98, %p99
      %p101 = scmp.ne.s32.totalorder %s93, %s95
      %p102 = scmp.eq.s32.totalorder %s22, 1
      %p103 = por %p101, %p102
      %p104 = scmp.ne.s32.totalorder %s95, %s96
      %p105 = scmp.eq.s32.totalorder %s22, 0
      %p106 = por %p104, %p105
      %p107 = scmp.ne.s32.totalorder %s95, %s96
      %p108 = scmp.eq.s32.totalorder %s23, 1
      %p109 = por %p107, %p108
      %p111 = scmp.ne.s32.totalorder %s96, %s110
      %p112 = scmp.eq.s32.totalorder %s23, 0
      %p113 = por %p111, %p112
      %s115 = sadd.s32 %s114, 1
      %p118 = scmp.eq.s32.totalorder %s17, 1
      %p119 = scmp.ne.s32.totalorder %s114, %s116
      %p120 = scmp.eq.s32.totalorder %s17, 0
      %p121 = por %p119, %p120
      %p122 = scmp.ne.s32.totalorder %s114, %s116
      %p123 = scmp.eq.s32.totalorder %s22, 1
      %p124 = por %p122, %p123
      %p125 = scmp.ne.s32.totalorder %s116, %s117
      %p126 = scmp.eq.s32.totalorder %s22, 0
      %p127 = por %p125, %p126
      %p128 = scmp.ne.s32.totalorder %s116, %s117
      %p129 = scmp.eq.s32.totalorder %s23, 1
      %p130 = por %p128, %p129
      %p132 = scmp.ne.s32.totalorder %s117, %s131
      %p133 = scmp.eq.s32.totalorder %s23, 0
      %p134 = por %p132, %p133
      %s136 = sadd.s32 %s135, 1
      %p139 = scmp.eq.s32.totalorder %s17, 1
      %p140 = scmp.ne.s32.totalorder %s135, %s137
      %p141 = scmp.eq.s32.totalorder %s17, 0
      %p142 = por %p140, %p141
      %p143 = scmp.ne.s32.totalorder %s135, %s137
      %p144 = scmp.eq.s32.totalorder %s22, 1
      %p145 = por %p143, %p144
      %p146 = scmp.ne.s32.totalorder %s137, %s138
      %p147 = scmp.eq.s32.totalorder %s22, 0
      %p148 = por %p146, %p147
      %p149 = scmp.ne.s32.totalorder %s137, %s138
      %p150 = scmp.eq.s32.totalorder %s23, 1
      %p151 = por %p149, %p150
      %p153 = scmp.ne.s32.totalorder %s138, %s152
      %p154 = scmp.eq.s32.totalorder %s23, 0
      %p155 = por %p153, %p154
      %s157 = sadd.s32 %s156, 1
      %p160 = scmp.eq.s32.totalorder %s17, 1
      %p161 = scmp.ne.s32.totalorder %s156, %s158
      %p162 = scmp.eq.s32.totalorder %s17, 0
      %p163 = por %p161, %p162
      %p164 = scmp.ne.s32.totalorder %s156, %s158
      %p165 = scmp.eq.s32.totalorder %s22, 1
      %p166 = por %p164, %p165
      %p167 = scmp.ne.s32.totalorder %s158, %s159
      %p168 = scmp.eq.s32.totalorder %s22, 0
      %p169 = por %p167, %p168
      %p170 = scmp.ne.s32.totalorder %s158, %s159
      %p171 = scmp.eq.s32.totalorder %s23, 1
      %p172 = por %p170, %p171
      %p174 = scmp.ne.s32.totalorder %s159, %s173
      %p175 = scmp.eq.s32.totalorder %s23, 0
      %p176 = por %p174, %p175
      %s177 = ssub.s32 %s17, %s24
      %p178 = scmp.eq.s32.totalorder %s177, 0
      %s180 = sadd.s32 %s179, 1
      %s181 = scalar_select %p178, %s179, %s180
      %p184 = pneg %p178
      %p185 = scmp.eq.s32.totalorder %s17, 1
      %p186 = por %p184, %p185
      %p187 = scmp.ne.s32.totalorder %s179, %s182
      %p188 = scmp.eq.s32.totalorder %s17, 0
      %p189 = por %p187, %p188
      %p190 = scmp.ne.s32.totalorder %s179, %s182
      %p191 = scmp.eq.s32.totalorder %s22, 1
      %p192 = por %p190, %p191
      %p193 = scmp.ne.s32.totalorder %s182, %s183
      %p194 = scmp.eq.s32.totalorder %s22, 0
      %p195 = por %p193, %p194
      %p196 = scmp.ne.s32.totalorder %s182, %s183
      %p197 = scmp.eq.s32.totalorder %s23, 1
      %p198 = por %p196, %p197
      %p200 = scmp.ne.s32.totalorder %s183, %s199
      %p201 = scmp.eq.s32.totalorder %s23, 0
      %p202 = por %p200, %p201
      %p203 = scmp.le.s32.totalorder 1, %s17
      %p204 = scmp.lt.s32.totalorder %s17, 3
      %p205 = pnand %p203, %p204
      %p206 = pneg %p205
      // Predicated region
      $region9: #{tpu_custom_call.1} parent=5 // pred_check
        _
      $region10: #{tpu_custom_call.1} parent=5 // pred_check_branch
        %208 = sbr.rel (%p205) target = $region12
      $region11: #{tpu_custom_call.1} parent=5 // pred_region
        %s209 = ssub.s32 %s17, 1
        // Predicated region
        $region13: #{tpu_custom_call.1} parent=11 // pred_check
          %p210 = pneg %p64
        $region14: #{tpu_custom_call.1} parent=11 // pred_check_branch
          %212 = sbr.rel (%p210) target = $region16
        $region15: #{tpu_custom_call.1} parent=11 // pred_region
          _
        $region16: #{tpu_custom_call.1} parent=11 // pred_fallthru
          _
        // Predicated region
        $region17: #{tpu_custom_call.1} parent=11 // pred_check
          %p213 = pneg %p85
        $region18: #{tpu_custom_call.1} parent=11 // pred_check_branch
          %215 = sbr.rel (%p213) target = $region20
        $region19: #{tpu_custom_call.1} parent=11 // pred_region
          _
        $region20: #{tpu_custom_call.1} parent=11 // pred_fallthru
          _
        // Predicated region
        $region21: #{tpu_custom_call.1} parent=11 // pred_check
          %p216 = pneg %p106
        $region22: #{tpu_custom_call.1} parent=11 // pred_check_branch
          %218 = sbr.rel (%p216) target = $region24
        $region23: #{tpu_custom_call.1} parent=11 // pred_region
          _
        $region24: #{tpu_custom_call.1} parent=11 // pred_fallthru
          _
        // Predicated region
        $region25: #{tpu_custom_call.1} parent=11 // pred_check
          %p219 = pneg %p127
        $region26: #{tpu_custom_call.1} parent=11 // pred_check_branch
          %221 = sbr.rel (%p219) target = $region28
        $region27: #{tpu_custom_call.1} parent=11 // pred_region
          _
        $region28: #{tpu_custom_call.1} parent=11 // pred_fallthru
          _
        // Predicated region
        $region29: #{tpu_custom_call.1} parent=11 // pred_check
          %p222 = pneg %p148
        $region30: #{tpu_custom_call.1} parent=11 // pred_check_branch
          %224 = sbr.rel (%p222) target = $region32
        $region31: #{tpu_custom_call.1} parent=11 // pred_region
          _
        $region32: #{tpu_custom_call.1} parent=11 // pred_fallthru
          _
        // Predicated region
        $region33: #{tpu_custom_call.1} parent=11 // pred_check
          %p225 = pneg %p169
        $region34: #{tpu_custom_call.1} parent=11 // pred_check_branch
          %227 = sbr.rel (%p225) target = $region36
        $region35: #{tpu_custom_call.1} parent=11 // pred_region
          _
        $region36: #{tpu_custom_call.1} parent=11 // pred_fallthru
          _
      $region12: #{tpu_custom_call.1} parent=5 // pred_fallthru
        _
      %p228 = scmp.lt.s32.totalorder %s17, 2
      // Predicated region
      $region37: #{tpu_custom_call.1} parent=5 // pred_check
        %p229 = pneg %p228
      $region38: #{tpu_custom_call.1} parent=5 // pred_check_branch
        %231 = sbr.rel (%p229) target = $region40
      $region39: #{tpu_custom_call.1} parent=5 // pred_region
        // Predicated region
        $region41: #{tpu_custom_call.1} parent=39 // pred_check
          %p232 = pneg %p37
        $region42: #{tpu_custom_call.1} parent=39 // pred_check_branch
          %234 = sbr.rel (%p232) target = $region44
        $region43: #{tpu_custom_call.1} parent=39 // pred_region
          %s235 = smul.u32 16, %s17
          %p236 = scmp.lt.s32.totalorder %s235, 31
          %s237 = scalar_select %p236, %s235, 31
          %s238 = smul.addr %s237, 8
          %s239 = scalar_lea.vmem %s0, %s238
          %s240 = smul.u32 16, %s17
        $region44: #{tpu_custom_call.1} parent=39 // pred_fallthru
          _
      $region40: #{tpu_custom_call.1} parent=5 // pred_fallthru
        _
      %p241 = scmp.le.s32.totalorder 1, %s17
      %p242 = scmp.lt.s32.totalorder %s17, 3
      %p243 = pnand %p241, %p242
      %p244 = pneg %p243
      // Predicated region
      $region45: #{tpu_custom_call.1} parent=5 // pred_check
        _
      $region46: #{tpu_custom_call.1} parent=5 // pred_check_branch
        %246 = sbr.rel (%p243) target = $region48
      $region47: #{tpu_custom_call.1} parent=5 // pred_region
        %s247 = ssub.s32 %s17, 1
        %s248 = smul.u32 16, %s22
        %p249 = scmp.lt.s32.totalorder %s248, 31
        %s250 = scalar_select %p249, %s248, 31
        %s251 = smul.addr %s250, 8
        %s252 = scalar_lea.vmem %s0, %s251
        %p253 = pneg %p43
        %p254 = pneg %p40
        %p255 = pneg %p64
        %p256 = pneg %p61
        %p257 = pneg %p85
        %p258 = pneg %p82
        %p259 = pneg %p106
        %p260 = pneg %p103
        %p261 = pneg %p127
        %p262 = pneg %p124
        %p263 = pneg %p148
        %p264 = pneg %p145
        %p265 = pneg %p169
        %p266 = pneg %p166
        %p267 = pneg %p195
        %p268 = pneg %p192
        %s269 = sand.u32 %s182, 1
        %s270 = scalar_lea.sflag [#allocation4], %s269
        %s271 = sand.u32 %s182, 1
        %s272 = scalar_lea.vmem [#allocation3], %s271
        %s273 = smul.u32 16, %s22
        %p274 = scmp.lt.s32.totalorder %s273, 31
        %s275 = scalar_select %p274, %s273, 31
        %s276 = smul.addr %s275, 8
        %s277 = scalar_lea.vmem %s0, %s276
        %s278 = smul.u32 16, %s22
        %v280 = vld [vmem:[%s277] sm:$0xff]
        %v281 = vld [vmem:[%s277 + $0x8] sm:$0xff]
        %v282 = vld [vmem:[%s277 + $0x10] sm:$0xff]
        %v283 = vld [vmem:[%s277 + $0x18] sm:$0xff]
        %v284 = vld [vmem:[%s277 + $0x20] sm:$0xff]
        %v285 = vld [vmem:[%s277 + $0x28] sm:$0xff]
        %v286 = vld [vmem:[%s277 + $0x30] sm:$0xff]
        %v287 = vld [vmem:[%s277 + $0x38] sm:$0xff]
        %v288 = vld [vmem:[%s277 + $0x40] sm:$0xff]
        %v289 = vld [vmem:[%s277 + $0x48] sm:$0xff]
        %v290 = vld [vmem:[%s277 + $0x50] sm:$0xff]
        %v291 = vld [vmem:[%s277 + $0x58] sm:$0xff]
        %v292 = vld [vmem:[%s277 + $0x60] sm:$0xff]
        %v293 = vld [vmem:[%s277 + $0x68] sm:$0xff]
        %v294 = vld [vmem:[%s277 + $0x70] sm:$0xff]
        %v295 = vld [vmem:[%s277 + $0x78] sm:$0xff]
        %v296 = vpack.c.bf16 %v281, %v280
        %v297 = vpack.c.bf16 %v283, %v282
        %v298 = vpack.c.bf16 %v285, %v284
        %v299 = vpack.c.bf16 %v287, %v286
        %v300 = vpack.c.bf16 %v289, %v288
        %v301 = vpack.c.bf16 %v291, %v290
        %v302 = vpack.c.bf16 %v293, %v292
        %v303 = vpack.c.bf16 %v295, %v294
        %v304 = vld [vmem:[%s1] sm:$0xf]
        %v305 = vld [vmem:[%s1 + $0x4] sm:$0xf]
        %v306 = vld [vmem:[%s1 + $0x8] sm:$0xf]
        %v307 = vld [vmem:[%s1 + $0xc] sm:$0xf]
        %v308 = vld [vmem:[%s2] sm:$0x1]
        %v310 = vlaneseq
        %v311 = vshrl.u32 %v310, 7
        %v312 = vsub.s32 0, %v311
        %v313 = vrot.slane %v308, %v312
        %v319 = vunpack.c.l.b16 %v304
        %v320 = vunpack.c.l.b16 %v305
        %v321 = vunpack.c.l.b16 %v306
        %v322 = vunpack.c.l.b16 %v307
        %v323 = vpack.c.b16 %v320, %v319
        %v324 = vpack.c.b16 %v322, %v321
        %vm327 = vcmask 261120
        %v329 = vsel %vm327, %v296, 0
        %v332 = vsel %vm327, %v297, 0
        %v335 = vsel %vm327, %v298, 0
        %v338 = vsel %vm327, %v299, 0
        %v341 = vsel %vm327, %v300, 0
        %v344 = vsel %vm327, %v301, 0
        %v347 = vsel %vm327, %v302, 0
        %v350 = vsel %vm327, %v303, 0
        %352 = vmatprep.subr.bf16.mxu0 0
        %353 = vmatpush1.bf16.msra.mxu0 0
        %354 = vmatprep.subr.bf16.mxu0 0
        %355 = vmatpush1.bf16.msra.mxu0 0
        %356 = vmatprep.subr.bf16.mxu0 0
        %357 = vmatpush1.bf16.msra.mxu0 0
        %358 = vmatprep.subr.bf16.mxu0 0
        %359 = vmatpush1.bf16.msra.mxu0 0
        %360 = vmatprep.subr.bf16.mxu0 0
        %361 = vmatpush1.bf16.msra.mxu0 0
        %362 = vmatprep.subr.bf16.mxu0 0
        %363 = vmatpush1.bf16.msra.mxu0 0
        %364 = vmatprep.subr.bf16.mxu0 0
        %365 = vmatpush1.bf16.msra.mxu0 %v324
        %366 = vmatprep.subr.bf16.mxu0 0
        %367 = vmatpush1.bf16.msra.mxu0 %v323
        %368 = vmatprep.subr.bf16.mxu0 0
        %369 = vmatpush2.bf16.msra.mxu0 0
        %370 = vmatprep.subr.bf16.mxu0 0
        %371 = vmatpush2.bf16.msra.mxu0 0
        %372 = vmatprep.subr.bf16.mxu0 0
        %373 = vmatpush2.bf16.msra.mxu0 0
        %374 = vmatprep.subr.bf16.mxu0 0
        %375 = vmatpush2.bf16.msra.mxu0 0
        %376 = vmatprep.subr.bf16.mxu0 0
        %377 = vmatpush2.bf16.msra.mxu0 0
        %378 = vmatprep.subr.bf16.mxu0 0
        %379 = vmatpush2.bf16.msra.mxu0 0
        %380 = vmatprep.subr.bf16.mxu0 0
        %381 = vmatpush2.bf16.msra.mxu0 0
        %382 = vmatprep.subr.bf16.mxu0 0
        %383 = vmatpush2.bf16.msra.mxu0 0
        %384 = vmatprep.mubr.bf16.mxu0 0
        %385 = vmatmul.mubr.bf16.gmra.mxu0 %v329
        %v386 = vpop.f32.mrf.mxu0
        %v387 = vadd.f32 %v313, %v386
        %v388 = vpop.f32.mrf.mxu0
        %v389 = vpop.f32.mrf.mxu0
        %v390 = vadd.f32 %v313, %v389
        %v391 = vpop.f32.mrf.mxu0
        %392 = vmatprep.mubr.bf16.mxu0 0
        %393 = vmatmul.mubr.bf16.gmra.mxu0 %v332
        %v394 = vpop.f32.mrf.mxu0
        %v395 = vadd.f32 %v313, %v394
        %v396 = vpop.f32.mrf.mxu0
        %v397 = vpop.f32.mrf.mxu0
        %v398 = vadd.f32 %v313, %v397
        %v399 = vpop.f32.mrf.mxu0
        %400 = vmatprep.mubr.bf16.mxu0 0
        %401 = vmatmul.mubr.bf16.gmra.mxu0 %v335
        %v402 = vpop.f32.mrf.mxu0
        %v403 = vadd.f32 %v313, %v402
        %v404 = vpop.f32.mrf.mxu0
        %v405 = vpop.f32.mrf.mxu0
        %v406 = vadd.f32 %v313, %v405
        %v407 = vpop.f32.mrf.mxu0
        %408 = vmatprep.mubr.bf16.mxu0 0
        %409 = vmatmul.mubr.bf16.gmra.mxu0 %v338
        %v410 = vpop.f32.mrf.mxu0
        %v411 = vadd.f32 %v313, %v410
        %v412 = vpop.f32.mrf.mxu0
        %v413 = vpop.f32.mrf.mxu0
        %v414 = vadd.f32 %v313, %v413
        %v415 = vpop.f32.mrf.mxu0
        %416 = vmatprep.mubr.bf16.mxu0 0
        %417 = vmatmul.mubr.bf16.gmra.mxu0 %v341
        %v418 = vpop.f32.mrf.mxu0
        %v419 = vadd.f32 %v313, %v418
        %v420 = vpop.f32.mrf.mxu0
        %v421 = vpop.f32.mrf.mxu0
        %v422 = vadd.f32 %v313, %v421
        %v423 = vpop.f32.mrf.mxu0
        %424 = vmatprep.mubr.bf16.mxu0 0
        %425 = vmatmul.mubr.bf16.gmra.mxu0 %v344
        %v426 = vpop.f32.mrf.mxu0
        %v427 = vadd.f32 %v313, %v426
        %v428 = vpop.f32.mrf.mxu0
        %v429 = vpop.f32.mrf.mxu0
        %v430 = vadd.f32 %v313, %v429
        %v431 = vpop.f32.mrf.mxu0
        %432 = vmatprep.mubr.bf16.mxu0 0
        %433 = vmatmul.mubr.bf16.gmra.mxu0 %v347
        %v434 = vpop.f32.mrf.mxu0
        %v435 = vadd.f32 %v313, %v434
        %v436 = vpop.f32.mrf.mxu0
        %v437 = vpop.f32.mrf.mxu0
        %v438 = vadd.f32 %v313, %v437
        %v439 = vpop.f32.mrf.mxu0
        %440 = vmatprep.mubr.bf16.mxu0 0
        %441 = vmatmul.mubr.bf16.gmra.mxu0 %v350
        %v442 = vpop.f32.mrf.mxu0
        %v443 = vadd.f32 %v313, %v442
        %v444 = vpop.f32.mrf.mxu0
        %v445 = vpop.f32.mrf.mxu0
        %v446 = vadd.f32 %v313, %v445
        %v447 = vpop.f32.mrf.mxu0
        %448 = vdwg.mxu0
        %v449 = vmax.f32 %v387, 0.0
        %v450 = vmax.f32 %v390, 0.0
        %v451 = vmax.f32 %v395, 0.0
        %v452 = vmax.f32 %v398, 0.0
        %v453 = vmax.f32 %v403, 0.0
        %v454 = vmax.f32 %v406, 0.0
        %v455 = vmax.f32 %v411, 0.0
        %v456 = vmax.f32 %v414, 0.0
        %v457 = vmax.f32 %v419, 0.0
        %v458 = vmax.f32 %v422, 0.0
        %v459 = vmax.f32 %v427, 0.0
        %v460 = vmax.f32 %v430, 0.0
        %v461 = vmax.f32 %v435, 0.0
        %v462 = vmax.f32 %v438, 0.0
        %v463 = vmax.f32 %v443, 0.0
        %v464 = vmax.f32 %v446, 0.0
        %v465 = vpack.c.bf16 %v450, %v449
        %v466 = vpack.c.bf16 %v452, %v451
        %v467 = vpack.c.bf16 %v454, %v453
        %v468 = vpack.c.bf16 %v456, %v455
        %v469 = vpack.c.bf16 %v458, %v457
        %v470 = vpack.c.bf16 %v460, %v459
        %v471 = vpack.c.bf16 %v462, %v461
        %v472 = vpack.c.bf16 %v464, %v463
        %v473 = vld [vmem:[%s3] sm:$0xf]
        %v474 = vld [vmem:[%s3 + $0x4] sm:$0xf]
        %v475 = vld [vmem:[%s3 + $0x8] sm:$0xf]
        %v476 = vld [vmem:[%s3 + $0xc] sm:$0xf]
        %v477 = vld [vmem:[%s3 + $0x10] sm:$0xf]
        %v478 = vld [vmem:[%s3 + $0x14] sm:$0xf]
        %v479 = vld [vmem:[%s3 + $0x18] sm:$0xf]
        %v480 = vld [vmem:[%s3 + $0x1c] sm:$0xf]
        %v481 = vld [vmem:[%s4] sm:$0x1]
        %v483 = vlaneseq
        %v484 = vshrl.u32 %v483, 7
        %v485 = vsub.s32 0, %v484
        %v486 = vrot.slane %v481, %v485
        %v496 = vunpack.c.l.b16 %v473
        %v497 = vunpack.c.l.b16 %v474
        %v498 = vunpack.c.l.b16 %v475
        %v499 = vunpack.c.l.b16 %v476
        %v500 = vunpack.c.l.b16 %v477
        %v501 = vunpack.c.l.b16 %v478
        %v502 = vunpack.c.l.b16 %v479
        %v503 = vunpack.c.l.b16 %v480
        %v504 = vpack.c.b16 %v497, %v496
        %v505 = vpack.c.b16 %v499, %v498
        %v506 = vpack.c.b16 %v501, %v500
        %v507 = vpack.c.b16 %v503, %v502
        %vm512 = vcmask 523264
        %v514 = vsel %vm512, %v465, 0
        %v517 = vsel %vm512, %v466, 0
        %v520 = vsel %vm512, %v467, 0
        %v523 = vsel %vm512, %v468, 0
        %v526 = vsel %vm512, %v469, 0
        %v529 = vsel %vm512, %v470, 0
        %v532 = vsel %vm512, %v471, 0
        %v535 = vsel %vm512, %v472, 0
        %537 = vmatprep.subr.bf16.mxu0 0
        %538 = vmatpush1.bf16.msra.mxu0 0
        %539 = vmatprep.subr.bf16.mxu0 0
        %540 = vmatpush1.bf16.msra.mxu0 0
        %541 = vmatprep.subr.bf16.mxu0 0
        %542 = vmatpush1.bf16.msra.mxu0 0
        %543 = vmatprep.subr.bf16.mxu0 0
        %544 = vmatpush1.bf16.msra.mxu0 0
        %545 = vmatprep.subr.bf16.mxu0 0
        %546 = vmatpush1.bf16.msra.mxu0 %v507
        %547 = vmatprep.subr.bf16.mxu0 0
        %548 = vmatpush1.bf16.msra.mxu0 %v506
        %549 = vmatprep.subr.bf16.mxu0 0
        %550 = vmatpush1.bf16.msra.mxu0 %v505
        %551 = vmatprep.subr.bf16.mxu0 0
        %552 = vmatpush1.bf16.msra.mxu0 %v504
        %553 = vmatprep.subr.bf16.mxu0 0
        %554 = vmatpush2.bf16.msra.mxu0 0
        %555 = vmatprep.subr.bf16.mxu0 0
        %556 = vmatpush2.bf16.msra.mxu0 0
        %557 = vmatprep.subr.bf16.mxu0 0
        %558 = vmatpush2.bf16.msra.mxu0 0
        %559 = vmatprep.subr.bf16.mxu0 0
        %560 = vmatpush2.bf16.msra.mxu0 0
        %561 = vmatprep.subr.bf16.mxu0 0
        %562 = vmatpush2.bf16.msra.mxu0 0
        %563 = vmatprep.subr.bf16.mxu0 0
        %564 = vmatpush2.bf16.msra.mxu0 0
        %565 = vmatprep.subr.bf16.mxu0 0
        %566 = vmatpush2.bf16.msra.mxu0 0
        %567 = vmatprep.subr.bf16.mxu0 0
        %568 = vmatpush2.bf16.msra.mxu0 0
        %569 = vmatprep.mubr.bf16.mxu0 0
        %570 = vmatmul.mubr.bf16.gmra.mxu0 %v514
        %v571 = vpop.f32.mrf.mxu0
        %v572 = vadd.f32 %v486, %v571
        %v573 = vpop.f32.mrf.mxu0
        %v574 = vpop.f32.mrf.mxu0
        %v575 = vadd.f32 %v486, %v574
        %v576 = vpop.f32.mrf.mxu0
        %577 = vmatprep.mubr.bf16.mxu0 0
        %578 = vmatmul.mubr.bf16.gmra.mxu0 %v517
        %v579 = vpop.f32.mrf.mxu0
        %v580 = vadd.f32 %v486, %v579
        %v581 = vpop.f32.mrf.mxu0
        %v582 = vpop.f32.mrf.mxu0
        %v583 = vadd.f32 %v486, %v582
        %v584 = vpop.f32.mrf.mxu0
        %585 = vmatprep.mubr.bf16.mxu0 0
        %586 = vmatmul.mubr.bf16.gmra.mxu0 %v520
        %v587 = vpop.f32.mrf.mxu0
        %v588 = vadd.f32 %v486, %v587
        %v589 = vpop.f32.mrf.mxu0
        %v590 = vpop.f32.mrf.mxu0
        %v591 = vadd.f32 %v486, %v590
        %v592 = vpop.f32.mrf.mxu0
        %593 = vmatprep.mubr.bf16.mxu0 0
        %594 = vmatmul.mubr.bf16.gmra.mxu0 %v523
        %v595 = vpop.f32.mrf.mxu0
        %v596 = vadd.f32 %v486, %v595
        %v597 = vpop.f32.mrf.mxu0
        %v598 = vpop.f32.mrf.mxu0
        %v599 = vadd.f32 %v486, %v598
        %v600 = vpop.f32.mrf.mxu0
        %601 = vmatprep.mubr.bf16.mxu0 0
        %602 = vmatmul.mubr.bf16.gmra.mxu0 %v526
        %v603 = vpop.f32.mrf.mxu0
        %v604 = vadd.f32 %v486, %v603
        %v605 = vpop.f32.mrf.mxu0
        %v606 = vpop.f32.mrf.mxu0
        %v607 = vadd.f32 %v486, %v606
        %v608 = vpop.f32.mrf.mxu0
        %609 = vmatprep.mubr.bf16.mxu0 0
        %610 = vmatmul.mubr.bf16.gmra.mxu0 %v529
        %v611 = vpop.f32.mrf.mxu0
        %v612 = vadd.f32 %v486, %v611
        %v613 = vpop.f32.mrf.mxu0
        %v614 = vpop.f32.mrf.mxu0
        %v615 = vadd.f32 %v486, %v614
        %v616 = vpop.f32.mrf.mxu0
        %617 = vmatprep.mubr.bf16.mxu0 0
        %618 = vmatmul.mubr.bf16.gmra.mxu0 %v532
        %v619 = vpop.f32.mrf.mxu0
        %v620 = vadd.f32 %v486, %v619
        %v621 = vpop.f32.mrf.mxu0
        %v622 = vpop.f32.mrf.mxu0
        %v623 = vadd.f32 %v486, %v622
        %v624 = vpop.f32.mrf.mxu0
        %625 = vmatprep.mubr.bf16.mxu0 0
        %626 = vmatmul.mubr.bf16.gmra.mxu0 %v535
        %v627 = vpop.f32.mrf.mxu0
        %v628 = vadd.f32 %v486, %v627
        %v629 = vpop.f32.mrf.mxu0
        %v630 = vpop.f32.mrf.mxu0
        %v631 = vadd.f32 %v486, %v630
        %v632 = vpop.f32.mrf.mxu0
        %633 = vdwg.mxu0
        %v634 = vmax.f32 %v572, 0.0
        %v635 = vmax.f32 %v575, 0.0
        %v636 = vmax.f32 %v580, 0.0
        %v637 = vmax.f32 %v583, 0.0
        %v638 = vmax.f32 %v588, 0.0
        %v639 = vmax.f32 %v591, 0.0
        %v640 = vmax.f32 %v596, 0.0
        %v641 = vmax.f32 %v599, 0.0
        %v642 = vmax.f32 %v604, 0.0
        %v643 = vmax.f32 %v607, 0.0
        %v644 = vmax.f32 %v612, 0.0
        %v645 = vmax.f32 %v615, 0.0
        %v646 = vmax.f32 %v620, 0.0
        %v647 = vmax.f32 %v623, 0.0
        %v648 = vmax.f32 %v628, 0.0
        %v649 = vmax.f32 %v631, 0.0
        %v650 = vld [vmem:[%s5] sm:$0x1]
        %v651 = vunpack.c.l.bf16 %v650
        %v652 = vlaneseq
        %v653 = vshrl.u32 %v652, 7
        %v654 = vsub.s32 0, %v653
        %v655 = vrot.slane %v651, %v654
        %v656 = vmul.f32 %v634, %v655
        %v657 = vmul.f32 %v635, %v655
        %v658 = vmul.f32 %v636, %v655
        %v659 = vmul.f32 %v637, %v655
        %v660 = vmul.f32 %v638, %v655
        %v661 = vmul.f32 %v639, %v655
        %v662 = vmul.f32 %v640, %v655
        %v663 = vmul.f32 %v641, %v655
        %v664 = vmul.f32 %v642, %v655
        %v665 = vmul.f32 %v643, %v655
        %v666 = vmul.f32 %v644, %v655
        %v667 = vmul.f32 %v645, %v655
        %v668 = vmul.f32 %v646, %v655
        %v669 = vmul.f32 %v647, %v655
        %v670 = vmul.f32 %v648, %v655
        %v671 = vmul.f32 %v649, %v655
        %672 = vadd.xlane.f32.xlu0 %v656
        %v673 = vpop.xlane.xlu0 %672
        %674 = vadd.xlane.f32.xlu0 %v657
        %v675 = vpop.xlane.xlu0 %674
        %676 = vadd.xlane.f32.xlu0 %v658
        %v677 = vpop.xlane.xlu0 %676
        %678 = vadd.xlane.f32.xlu0 %v659
        %v679 = vpop.xlane.xlu0 %678
        %680 = vadd.xlane.f32.xlu0 %v660
        %v681 = vpop.xlane.xlu0 %680
        %682 = vadd.xlane.f32.xlu0 %v661
        %v683 = vpop.xlane.xlu0 %682
        %684 = vadd.xlane.f32.xlu0 %v662
        %v685 = vpop.xlane.xlu0 %684
        %686 = vadd.xlane.f32.xlu0 %v663
        %v687 = vpop.xlane.xlu0 %686
        %688 = vadd.xlane.f32.xlu0 %v664
        %v689 = vpop.xlane.xlu0 %688
        %690 = vadd.xlane.f32.xlu0 %v665
        %v691 = vpop.xlane.xlu0 %690
        %692 = vadd.xlane.f32.xlu0 %v666
        %v693 = vpop.xlane.xlu0 %692
        %694 = vadd.xlane.f32.xlu0 %v667
        %v695 = vpop.xlane.xlu0 %694
        %696 = vadd.xlane.f32.xlu0 %v668
        %v697 = vpop.xlane.xlu0 %696
        %698 = vadd.xlane.f32.xlu0 %v669
        %v699 = vpop.xlane.xlu0 %698
        %700 = vadd.xlane.f32.xlu0 %v670
        %v701 = vpop.xlane.xlu0 %700
        %702 = vadd.xlane.f32.xlu0 %v671
        %v703 = vpop.xlane.xlu0 %702
        %s704 = sld [smem:[#allocation2]]
        %v705 = vstv %s704
        %v706 = vadd.f32 %v673, %v705
        %v707 = vadd.f32 %v675, %v705
        %v708 = vadd.f32 %v677, %v705
        %v709 = vadd.f32 %v679, %v705
        %v710 = vadd.f32 %v681, %v705
        %v711 = vadd.f32 %v683, %v705
        %v712 = vadd.f32 %v685, %v705
        %v713 = vadd.f32 %v687, %v705
        %v714 = vadd.f32 %v689, %v705
        %v715 = vadd.f32 %v691, %v705
        %v716 = vadd.f32 %v693, %v705
        %v717 = vadd.f32 %v695, %v705
        %v718 = vadd.f32 %v697, %v705
        %v719 = vadd.f32 %v699, %v705
        %v720 = vadd.f32 %v701, %v705
        %v721 = vadd.f32 %v703, %v705
        %v738 = vlaneseq
        %v739 = vand.u32 %v738, 127
        %v740 = vlaneseq
        %v741 = vshrl.u32 %v740, 7
        %v742 = vsub.s32 %v739, %v741
        %v743 = vrot.slane %v706, %v742
        %v744 = vadd.s32 %v739, 4294967288
        %v745 = vlaneseq
        %v746 = vshrl.u32 %v745, 7
        %v747 = vsub.s32 %v744, %v746
        %v748 = vrot.slane %v707, %v747
        %vm749 = vcmask 130112
        %v750 = vsel %vm749, %v748, %v743
        %v751 = vadd.s32 %v739, 4294967280
        %v752 = vlaneseq
        %v753 = vshrl.u32 %v752, 7
        %v754 = vsub.s32 %v751, %v753
        %v755 = vrot.slane %v708, %v754
        %vm756 = vcmask 195712
        %v757 = vsel %vm756, %v755, %v750
        %v758 = vadd.s32 %v739, 4294967272
        %v759 = vlaneseq
        %v760 = vshrl.u32 %v759, 7
        %v761 = vsub.s32 %v758, %v760
        %v762 = vrot.slane %v709, %v761
        %vm763 = vcmask 261312
        %v764 = vsel %vm763, %v762, %v757
        %v765 = vadd.s32 %v739, 4294967264
        %v766 = vlaneseq
        %v767 = vshrl.u32 %v766, 7
        %v768 = vsub.s32 %v765, %v767
        %v769 = vrot.slane %v710, %v768
        %vm770 = vcmask 326912
        %v771 = vsel %vm770, %v769, %v764
        %v772 = vadd.s32 %v739, 4294967256
        %v773 = vlaneseq
        %v774 = vshrl.u32 %v773, 7
        %v775 = vsub.s32 %v772, %v774
        %v776 = vrot.slane %v711, %v775
        %vm777 = vcmask 392512
        %v778 = vsel %vm777, %v776, %v771
        %v779 = vadd.s32 %v739, 4294967248
        %v780 = vlaneseq
        %v781 = vshrl.u32 %v780, 7
        %v782 = vsub.s32 %v779, %v781
        %v783 = vrot.slane %v712, %v782
        %vm784 = vcmask 458112
        %v785 = vsel %vm784, %v783, %v778
        %v786 = vadd.s32 %v739, 4294967240
        %v787 = vlaneseq
        %v788 = vshrl.u32 %v787, 7
        %v789 = vsub.s32 %v786, %v788
        %v790 = vrot.slane %v713, %v789
        %vm791 = vcmask 523712
        %v792 = vsel %vm791, %v790, %v785
        %v793 = vadd.s32 %v739, 4294967232
        %v794 = vlaneseq
        %v795 = vshrl.u32 %v794, 7
        %v796 = vsub.s32 %v793, %v795
        %v797 = vrot.slane %v714, %v796
        %vm798 = vcmask 589312
        %v799 = vsel %vm798, %v797, %v792
        %v800 = vadd.s32 %v739, 4294967224
        %v801 = vlaneseq
        %v802 = vshrl.u32 %v801, 7
        %v803 = vsub.s32 %v800, %v802
        %v804 = vrot.slane %v715, %v803
        %vm805 = vcmask 654912
        %v806 = vsel %vm805, %v804, %v799
        %v807 = vadd.s32 %v739, 4294967216
        %v808 = vlaneseq
        %v809 = vshrl.u32 %v808, 7
        %v810 = vsub.s32 %v807, %v809
        %v811 = vrot.slane %v716, %v810
        %vm812 = vcmask 720512
        %v813 = vsel %vm812, %v811, %v806
        %v814 = vadd.s32 %v739, 4294967208
        %v815 = vlaneseq
        %v816 = vshrl.u32 %v815, 7
        %v817 = vsub.s32 %v814, %v816
        %v818 = vrot.slane %v717, %v817
        %vm819 = vcmask 786112
        %v820 = vsel %vm819, %v818, %v813
        %v821 = vadd.s32 %v739, 4294967200
        %v822 = vlaneseq
        %v823 = vshrl.u32 %v822, 7
        %v824 = vsub.s32 %v821, %v823
        %v825 = vrot.slane %v718, %v824
        %vm826 = vcmask 851712
        %v827 = vsel %vm826, %v825, %v820
        %v828 = vadd.s32 %v739, 4294967192
        %v829 = vlaneseq
        %v830 = vshrl.u32 %v829, 7
        %v831 = vsub.s32 %v828, %v830
        %v832 = vrot.slane %v719, %v831
        %vm833 = vcmask 917312
        %v834 = vsel %vm833, %v832, %v827
        %v835 = vadd.s32 %v739, 4294967184
        %v836 = vlaneseq
        %v837 = vshrl.u32 %v836, 7
        %v838 = vsub.s32 %v835, %v837
        %v839 = vrot.slane %v720, %v838
        %vm840 = vcmask 982912
        %v841 = vsel %vm840, %v839, %v834
        %v842 = vadd.s32 %v739, 4294967176
        %v843 = vlaneseq
        %v844 = vshrl.u32 %v843, 7
        %v845 = vsub.s32 %v842, %v844
        %v846 = vrot.slane %v721, %v845
        %vm847 = vcmask 1048512
        %v848 = vsel %vm847, %v846, %v841
        %850 = vst [vmem:[%s272] sm:$0x1] %v848
        %s851 = sand.u32 %s182, 1
        %s852 = scalar_lea.sflag [#allocation4], %s851
        %s853 = sand.u32 %s182, 1
        %s854 = scalar_lea.vmem [#allocation3], %s853
        // Predicated region
        $region49: #{tpu_custom_call.1} parent=47 // pred_check
          %p855 = pneg %p192
        $region50: #{tpu_custom_call.1} parent=47 // pred_check_branch
          %857 = sbr.rel (%p855) target = $region52
        $region51: #{tpu_custom_call.1} parent=47 // pred_region
          %s859 = ssub.s32 16, 16
          %860 = vsyncadd %s852, %s859
          %s861 = smul.addr %s22, 16
          %s862 = scalar_lea.hbm %s7, %s861
          %s864 = sshll.u32 %s854, 4
          %s865 = int_to_ptr.vmem [resolvable:$true] %s864
          %867 = dma.vmem_to_hbm [thread:$0]  %s865, 16, %s862, %s852
        $region52: #{tpu_custom_call.1} parent=47 // pred_fallthru
          _
      $region48: #{tpu_custom_call.1} parent=5 // pred_fallthru
        _
      %p868 = scmp.le.s32.totalorder 2, %s17
      // Predicated region
      $region53: #{tpu_custom_call.1} parent=5 // pred_check
        %p869 = pneg %p868
      $region54: #{tpu_custom_call.1} parent=5 // pred_check_branch
        %871 = sbr.rel (%p869) target = $region56
      $region55: #{tpu_custom_call.1} parent=5 // pred_region
        %s872 = ssub.s32 %s17, 2
        // Predicated region
        $region57: #{tpu_custom_call.1} parent=55 // pred_check
          %p873 = pneg %p198
        $region58: #{tpu_custom_call.1} parent=55 // pred_check_branch
          %875 = sbr.rel (%p873) target = $region60
        $region59: #{tpu_custom_call.1} parent=55 // pred_region
          %s876 = sand.u32 %s183, 1
          %s877 = scalar_lea.sflag [#allocation4], %s876
          %s878 = sand.u32 %s183, 1
          %s879 = scalar_lea.vmem [#allocation3], %s878
          %880 = dma.done %s877, 16
        $region60: #{tpu_custom_call.1} parent=55 // pred_fallthru
          _
      $region56: #{tpu_custom_call.1} parent=5 // pred_fallthru
        _
    $region6: #{tpu_custom_call.1} parent=1 // loop_footer
      %s21 = sadd.s32 1, %s17
    $region7: #{tpu_custom_call.1} parent=1 // loop_footer_branch
      %16 = sbr.rel target = $region3
    $region8: #{tpu_custom_call.1} parent=1 // loop_exit
      _
    %881 = vsyncpa [#allocation4], 1
    %s882 = scalar_lea.sflag [#allocation4], 1
    %883 = vsyncpa %s882, 1

</llo_original>
